<compile_context>
chip_gen: v5e
topology: v5e:2x2
jax: 0.10.0
libtpu: 0.0.40
codegen_flags: <defaults>
</compile_context>

<pallas_src>
import jax
import jax.numpy as jnp
from jax.experimental import pallas as pl
from jax.experimental.pallas import tpu as pltpu

_LANE = 128
_SUBLANE = 8


def _round_up(x, m):
    return (x + m - 1) // m * m


def ca_kernel(x_ref, wm_ref, wl_ref, bm_ref, bl_ref, eps_ref,
              out_ref, mean_ref, logvar_ref):
    # Two lane-dense matmuls on the MXU (bf16 inputs, f32 accumulation).
    x = x_ref[...]                                                  # (TB, indim) bf16
    mean = jnp.dot(x, wm_ref[...], preferred_element_type=jnp.float32)
    logvar = jnp.dot(x, wl_ref[...], preferred_element_type=jnp.float32)

    # f32 epilogue: bias + ReLU (ReLU before the split == ReLU on each half).
    mean = jnp.maximum(mean + bm_ref[...], 0.0)
    logvar = jnp.maximum(logvar + bl_ref[...], 0.0)

    # Reparameterization: output = mean + eps * exp(0.5 * logvar).
    std = jnp.exp(logvar * 0.5)
    out_ref[...] = (mean + eps_ref[...] * std).astype(out_ref.dtype)
    mean_ref[...] = mean.astype(mean_ref.dtype)
    logvar_ref[...] = logvar.astype(logvar_ref.dtype)


def ca_forward(x, weight, bias, eps, outdim, *, tile_b=512):
    """CA forward pass.

    x:      (B, indim)          float32
    weight: (2*outdim, indim)   PyTorch nn.Linear layout
    bias:   (2*outdim,)
    eps:    (B, outdim)         standard-normal noise (torch.randn equivalent)
    returns (output, mean, logvar), each (B, outdim) float32
    """
    B, indim = x.shape
    d_p = _round_up(outdim, _LANE)

    # --- parameter prep (in a real model this happens once at load time) ---
    w_mean_t = jnp.zeros((indim, d_p), jnp.bfloat16)
    w_mean_t = w_mean_t.at[:, :outdim].set(weight[:outdim, :].T.astype(jnp.bfloat16))
    w_logvar_t = jnp.zeros((indim, d_p), jnp.bfloat16)
    w_logvar_t = w_logvar_t.at[:, :outdim].set(weight[outdim:, :].T.astype(jnp.bfloat16))
    b_mean = jnp.zeros((1, d_p), jnp.float32).at[:, :outdim].set(bias[:outdim])
    b_logvar = jnp.zeros((1, d_p), jnp.float32).at[:, :outdim].set(bias[outdim:])

    # --- batch tiling (sized to also fit v7x's smaller VMEM comfortably) ---
    tile_b = min(tile_b, _round_up(B, _SUBLANE))
    b_p = _round_up(B, tile_b)
    x_b = jnp.zeros((b_p, indim), jnp.bfloat16).at[:B].set(x.astype(jnp.bfloat16))
    eps_p = jnp.zeros((b_p, d_p), jnp.float32).at[:B, :outdim].set(eps)

    grid = (b_p // tile_b,)
    out_shapes = tuple(
        jax.ShapeDtypeStruct((b_p, d_p), jnp.float32) for _ in range(3))

    bytes_accessed = (
        b_p * indim * 2                 # x (bf16)
        + 2 * indim * d_p * 2           # two weight halves (bf16)
        + 2 * d_p * 4                   # biases
        + b_p * d_p * 4                 # eps
        + 3 * b_p * d_p * 4)            # three outputs

    out, mean, logvar = pl.pallas_call(
        ca_kernel,
        out_shape=out_shapes,
        grid_spec=pltpu.PrefetchScalarGridSpec(
            num_scalar_prefetch=0,
            grid=grid,
            in_specs=[
                pl.BlockSpec((tile_b, indim), lambda i: (i, 0)),   # x tile
                pl.BlockSpec((indim, d_p), lambda i: (0, 0)),      # W_mean^T (resident)
                pl.BlockSpec((indim, d_p), lambda i: (0, 0)),      # W_logvar^T (resident)
                pl.BlockSpec((1, d_p), lambda i: (0, 0)),          # b_mean
                pl.BlockSpec((1, d_p), lambda i: (0, 0)),          # b_logvar
                pl.BlockSpec((tile_b, d_p), lambda i: (i, 0)),     # eps tile
            ],
            out_specs=(
                pl.BlockSpec((tile_b, d_p), lambda i: (i, 0)),
                pl.BlockSpec((tile_b, d_p), lambda i: (i, 0)),
                pl.BlockSpec((tile_b, d_p), lambda i: (i, 0)),
            ),
        ),
        compiler_params=pltpu.CompilerParams(
            dimension_semantics=("parallel",)),
        cost_estimate=pl.CostEstimate(
            flops=2 * B * indim * 2 * outdim,
            transcendentals=B * outdim,
            bytes_accessed=bytes_accessed),
    )(x_b, w_mean_t, w_logvar_t, b_mean, b_logvar, eps_p)

    return out[:B, :outdim], mean[:B, :outdim], logvar[:B, :outdim]


if __name__ == "__main__":
    # Small shapes consistent with the module: CA(indim=32, outdim=16), batch=2.
    B, indim, outdim = 2, 32, 16

    key = jax.random.PRNGKey(0)
    kx, kw, kb, ke = jax.random.split(key, 4)

    x = jax.random.normal(kx, (B, indim), dtype=jnp.float32)
    weight = jax.random.normal(kw, (2 * outdim, indim), dtype=jnp.float32) * 0.1
    bias = jax.random.normal(kb, (2 * outdim,), dtype=jnp.float32) * 0.1
    # TODO(synk): eps could be generated in-kernel with pltpu.prng_seed +
    # pltpu.stateful_normal to drop one HBM input stream; kept as an input here
    # so the reparameterization is deterministic and checkable.
    eps = jax.random.normal(ke, (B, outdim), dtype=jnp.float32)

    output, mean, logvar = ca_forward(x, weight, bias, eps, outdim)
    jax.block_until_ready((output, mean, logvar))

    # Reference check (bf16-cast inputs to mirror the MXU precision).
    xb = x.astype(jnp.bfloat16).astype(jnp.float32)
    wb = weight.astype(jnp.bfloat16).astype(jnp.float32)
    h_ref = jnp.maximum(xb @ wb.T + bias, 0.0)
    mean_ref = h_ref[:, :outdim]
    logvar_ref = h_ref[:, outdim:]
    out_ref = mean_ref + eps * jnp.exp(0.5 * logvar_ref)

    assert output.shape == (B, outdim) and mean.shape == (B, outdim)
    assert jnp.allclose(output, out_ref, atol=2e-3, rtol=2e-3)
    assert jnp.allclose(mean, mean_ref, atol=2e-3, rtol=2e-3)
    assert jnp.allclose(logvar, logvar_ref, atol=2e-3, rtol=2e-3)

    print("KERNEL_OK")
</pallas_src>

<mosaic_0001>
module attributes {stable_mosaic.version = 11 : i64} {
  func.func @ca_kernel(%arg0: i32, %arg1: memref<8x32xbf16, #tpu.memory_space<vmem>>, %arg2: memref<32x128xbf16, #tpu.memory_space<vmem>>, %arg3: memref<32x128xbf16, #tpu.memory_space<vmem>>, %arg4: memref<1x128xf32, #tpu.memory_space<vmem>>, %arg5: memref<1x128xf32, #tpu.memory_space<vmem>>, %arg6: memref<8x128xf32, #tpu.memory_space<vmem>>, %arg7: memref<8x128xf32, #tpu.memory_space<vmem>>, %arg8: memref<8x128xf32, #tpu.memory_space<vmem>>, %arg9: memref<8x128xf32, #tpu.memory_space<vmem>>) attributes {dimension_semantics = [#tpu.dimension_semantics<parallel>], iteration_bounds = array<i64: 1>, scalar_prefetch = 0 : i64, scratch_operands = 0 : i64, tpu.core_type = #tpu.core_type<tc>, window_params = [{transform_indices = @transform_0, window_bounds = array<i64: 8, 32>}, {pipeline_mode = #tpu.pipeline_mode<synchronous>, transform_indices = @transform_1, window_bounds = array<i64: 32, 128>}, {pipeline_mode = #tpu.pipeline_mode<synchronous>, transform_indices = @transform_2, window_bounds = array<i64: 32, 128>}, {pipeline_mode = #tpu.pipeline_mode<synchronous>, transform_indices = @transform_3, window_bounds = array<i64: 1, 128>}, {pipeline_mode = #tpu.pipeline_mode<synchronous>, transform_indices = @transform_4, window_bounds = array<i64: 1, 128>}, {transform_indices = @transform_5, window_bounds = array<i64: 8, 128>}, {transform_indices = @transform_6, window_bounds = array<i64: 8, 128>}, {transform_indices = @transform_7, window_bounds = array<i64: 8, 128>}, {transform_indices = @transform_8, window_bounds = array<i64: 8, 128>}]} {
    %c0 = arith.constant 0 : index
    %c0_0 = arith.constant 0 : index
    %0 = vector.load %arg1[%c0, %c0_0] : memref<8x32xbf16, #tpu.memory_space<vmem>>, vector<8x32xbf16>
    %c0_1 = arith.constant 0 : index
    %c0_2 = arith.constant 0 : index
    %1 = vector.load %arg2[%c0_1, %c0_2] : memref<32x128xbf16, #tpu.memory_space<vmem>>, vector<32x128xbf16>
    %cst = arith.constant dense<0.000000e+00> : vector<8x128xf32>
    %2 = tpu.matmul %0, %1, %cst {dimension_numbers = #tpu.dot_dimension_numbers<[1], [0], [0], [1], [0, 0, 1, 1], [], []>} : vector<8x32xbf16>, vector<32x128xbf16>, vector<8x128xf32> -> vector<8x128xf32>
    %c0_3 = arith.constant 0 : index
    %c0_4 = arith.constant 0 : index
    %3 = vector.load %arg3[%c0_3, %c0_4] : memref<32x128xbf16, #tpu.memory_space<vmem>>, vector<32x128xbf16>
    %cst_5 = arith.constant dense<0.000000e+00> : vector<8x128xf32>
    %4 = tpu.matmul %0, %3, %cst_5 {dimension_numbers = #tpu.dot_dimension_numbers<[1], [0], [0], [1], [0, 0, 1, 1], [], []>} : vector<8x32xbf16>, vector<32x128xbf16>, vector<8x128xf32> -> vector<8x128xf32>
    %c0_6 = arith.constant 0 : index
    %c0_7 = arith.constant 0 : index
    %5 = vector.load %arg4[%c0_6, %c0_7] : memref<1x128xf32, #tpu.memory_space<vmem>>, vector<1x128xf32>
    %6 = vector.broadcast %5 : vector<1x128xf32> to vector<8x128xf32>
    %7 = arith.addf %2, %6 : vector<8x128xf32>
    %cst_8 = arith.constant 0.000000e+00 : f32
    %8 = vector.broadcast %cst_8 : f32 to vector<8x128xf32>
    %9 = arith.maximumf %7, %8 : vector<8x128xf32>
    %c0_9 = arith.constant 0 : index
    %c0_10 = arith.constant 0 : index
    %10 = vector.load %arg5[%c0_9, %c0_10] : memref<1x128xf32, #tpu.memory_space<vmem>>, vector<1x128xf32>
    %11 = vector.broadcast %10 : vector<1x128xf32> to vector<8x128xf32>
    %12 = arith.addf %4, %11 : vector<8x128xf32>
    %cst_11 = arith.constant 0.000000e+00 : f32
    %13 = vector.broadcast %cst_11 : f32 to vector<8x128xf32>
    %14 = arith.maximumf %12, %13 : vector<8x128xf32>
    %cst_12 = arith.constant 5.000000e-01 : f32
    %15 = vector.broadcast %cst_12 : f32 to vector<8x128xf32>
    %16 = arith.mulf %14, %15 : vector<8x128xf32>
    %17 = math.exp %16 : vector<8x128xf32>
    %c0_13 = arith.constant 0 : index
    %c0_14 = arith.constant 0 : index
    %18 = vector.load %arg6[%c0_13, %c0_14] : memref<8x128xf32, #tpu.memory_space<vmem>>, vector<8x128xf32>
    %19 = arith.mulf %18, %17 : vector<8x128xf32>
    %20 = arith.addf %9, %19 : vector<8x128xf32>
    %c0_15 = arith.constant 0 : index
    %c0_16 = arith.constant 0 : index
    %21 = vector.load %arg7[%c0_15, %c0_16] : memref<8x128xf32, #tpu.memory_space<vmem>>, vector<8x128xf32>
    tpu.vector_store %arg7[%c0_15, %c0_16], %20 {strides = array<i32>} : memref<8x128xf32, #tpu.memory_space<vmem>>, vector<8x128xf32>,
    %c0_17 = arith.constant 0 : index
    %c0_18 = arith.constant 0 : index
    %22 = vector.load %arg8[%c0_17, %c0_18] : memref<8x128xf32, #tpu.memory_space<vmem>>, vector<8x128xf32>
    tpu.vector_store %arg8[%c0_17, %c0_18], %9 {strides = array<i32>} : memref<8x128xf32, #tpu.memory_space<vmem>>, vector<8x128xf32>,
    %c0_19 = arith.constant 0 : index
    %c0_20 = arith.constant 0 : index
    %23 = vector.load %arg9[%c0_19, %c0_20] : memref<8x128xf32, #tpu.memory_space<vmem>>, vector<8x128xf32>
    tpu.vector_store %arg9[%c0_19, %c0_20], %14 {strides = array<i32>} : memref<8x128xf32, #tpu.memory_space<vmem>>, vector<8x128xf32>,
    return
  }
  func.func @transform_0(%arg0: i32) -> (i32, i32) {
    %c0_i32 = arith.constant 0 : i32
    %c0_i32_0 = arith.constant 0 : i32
    return %arg0, %c0_i32 : i32, i32
  }
  func.func @transform_1(%arg0: i32) -> (i32, i32) {
    %c0_i32 = arith.constant 0 : i32
    %c0_i32_0 = arith.constant 0 : i32
    %c0_i32_1 = arith.constant 0 : i32
    return %c0_i32, %c0_i32_0 : i32, i32
  }
  func.func @transform_2(%arg0: i32) -> (i32, i32) {
    %c0_i32 = arith.constant 0 : i32
    %c0_i32_0 = arith.constant 0 : i32
    %c0_i32_1 = arith.constant 0 : i32
    return %c0_i32, %c0_i32_0 : i32, i32
  }
  func.func @transform_3(%arg0: i32) -> (i32, i32) {
    %c0_i32 = arith.constant 0 : i32
    %c0_i32_0 = arith.constant 0 : i32
    %c0_i32_1 = arith.constant 0 : i32
    return %c0_i32, %c0_i32_0 : i32, i32
  }
  func.func @transform_4(%arg0: i32) -> (i32, i32) {
    %c0_i32 = arith.constant 0 : i32
    %c0_i32_0 = arith.constant 0 : i32
    %c0_i32_1 = arith.constant 0 : i32
    return %c0_i32, %c0_i32_0 : i32, i32
  }
  func.func @transform_5(%arg0: i32) -> (i32, i32) {
    %c0_i32 = arith.constant 0 : i32
    %c0_i32_0 = arith.constant 0 : i32
    return %arg0, %c0_i32 : i32, i32
  }
  func.func @transform_6(%arg0: i32) -> (i32, i32) {
    %c0_i32 = arith.constant 0 : i32
    %c0_i32_0 = arith.constant 0 : i32
    return %arg0, %c0_i32 : i32, i32
  }
  func.func @transform_7(%arg0: i32) -> (i32, i32) {
    %c0_i32 = arith.constant 0 : i32
    %c0_i32_0 = arith.constant 0 : i32
    return %arg0, %c0_i32 : i32, i32
  }
  func.func @transform_8(%arg0: i32) -> (i32, i32) {
    %c0_i32 = arith.constant 0 : i32
    %c0_i32_0 = arith.constant 0 : i32
    return %arg0, %c0_i32 : i32, i32
  }
}

</mosaic_0001>

<llo_original>
// kernel: tpu_custom_call.1
$region0: #{tpu_custom_call.1}
  #allocation0 [shape = 'u32[]', space=smem, size = 0x4, offset = 0x4, fixed_abs, tag = 'smem constant byte address 0x4 - core index']
  #allocation1 [shape = 'u32[72,128]{1,0:T(1,128)}', space=vmem, size = 0x9000, scoped, tag = 'internal scratch']
  %s0 = inlined_call_operand.hbm [shape: bf16[8,32], index: 0, kind: input, shape index: {}]
  %s1 = inlined_call_operand.hbm [shape: bf16[32,128], index: 1, kind: input, shape index: {}]
  %s2 = inlined_call_operand.hbm [shape: bf16[32,128], index: 2, kind: input, shape index: {}]
  %s3 = inlined_call_operand.vmem [shape: f32[1,128], index: 3, kind: input, shape index: {}]
  %s4 = inlined_call_operand.vmem [shape: f32[1,128], index: 4, kind: input, shape index: {}]
  %s5 = inlined_call_operand.hbm [shape: f32[8,128], index: 5, kind: input, shape index: {}]
  %s6 = inlined_call_operand.hbm [shape: f32[8,128], index: 6, kind: output, shape index: {0}]
  %s7 = inlined_call_operand.hbm [shape: f32[8,128], index: 7, kind: output, shape index: {1}]
  %s8 = inlined_call_operand.hbm [shape: f32[8,128], index: 8, kind: output, shape index: {2}]
  %9 = xla_tuple %s6, %s7, %s8
  %s10 = sld [smem:[#allocation0]]
  $region66: #{tpu_custom_call.1} parent=0
    _
  %s12 = ssub.s32 1, %s10
  %s13 = scalar_select 0, %s12, %s10
  $region1: #{tpu_custom_call.1} parent=0
    #allocation2 [shape = 'u8[2048]{0}', space=vmem, size = 0x800, scoped, tag = 'input window, operand 0, single buffered']
    #allocation3 [shape = 's32[1]{0}', space=sflag, size = 0x4, scoped, tag = 'scoped memory for tpu_custom_call.1']
    #allocation4 [shape = 's32[1]{0}', space=sflag, size = 0x4, scoped, tag = 'scoped memory for tpu_custom_call.1']
    #allocation5 [shape = 'u8[8192]{0}', space=vmem, size = 0x2000, scoped, tag = 'input window, operand 1, single buffered']
    #allocation6 [shape = 's32[1]{0}', space=sflag, size = 0x4, scoped, tag = 'scoped memory for tpu_custom_call.1']
    #allocation7 [shape = 'u8[8192]{0}', space=vmem, size = 0x2000, scoped, tag = 'input window, operand 2, single buffered']
    #allocation8 [shape = 'u8[4096]{0}', space=vmem, size = 0x1000, scoped, tag = 'input window, operand 5, single buffered']
    #allocation9 [shape = 's32[1]{0}', space=sflag, size = 0x4, scoped, tag = 'scoped memory for tpu_custom_call.1']
    #allocation10 [shape = 'u8[4096]{0}', space=vmem, size = 0x1000, scoped, tag = 'output window, operand 0, single buffered']
    #allocation11 [shape = 'u8[4096]{0}', space=vmem, size = 0x1000, scoped, tag = 'output window, operand 1, single buffered']
    #allocation12 [shape = 's32[1]{0}', space=sflag, size = 0x4, scoped, tag = 'scoped memory for tpu_custom_call.1']
    #allocation13 [shape = 'u8[4096]{0}', space=vmem, size = 0x1000, scoped, tag = 'output window, operand 2, single buffered']
    %14 = vsyncpa [#allocation3], 0
    %15 = vsyncpa [#allocation6], 0
    %16 = vsyncpa [#allocation9], 0
    %17 = vsyncpa [#allocation4], 0
    %18 = vsyncpa [#allocation12], 0
    // Predicated region
    $region2: #{tpu_custom_call.1} parent=1 // pred_check
      _
    $region3: #{tpu_custom_call.1} parent=1 // pred_check_branch
      %20 = sbr.rel (0) target = $region5
    $region4: #{tpu_custom_call.1} parent=1 // pred_region
      %22 = vsyncadd [#allocation3], 0
      %s24 = sshll.u32 %s0, 4
      %s25 = int_to_ptr.hbm [resolvable:$true] %s24
      %s26 = sshll.u32 [#allocation2], 4
      %s27 = int_to_ptr.vmem [resolvable:$true] %s26
      %29 = dma.hbm_to_vmem [thread:$0]  %s25, 64, %s27, [#allocation3]
    $region5: #{tpu_custom_call.1} parent=1 // pred_fallthru
      _
    // Predicated region
    $region6: #{tpu_custom_call.1} parent=1 // pred_check
      _
    $region7: #{tpu_custom_call.1} parent=1 // pred_check_branch
      %31 = sbr.rel (0) target = $region9
    $region8: #{tpu_custom_call.1} parent=1 // pred_region
      %33 = vsyncadd [#allocation6], 0
      %s34 = sshll.u32 %s1, 4
      %s35 = int_to_ptr.hbm [resolvable:$true] %s34
      %s36 = sshll.u32 [#allocation5], 4
      %s37 = int_to_ptr.vmem [resolvable:$true] %s36
      %42 = dma.hbm_to_vmem [thread:$0]  %s35, 256, %s37, [#allocation6], 64, 64, 4
    $region9: #{tpu_custom_call.1} parent=1 // pred_fallthru
      _
    // Predicated region
    $region10: #{tpu_custom_call.1} parent=1 // pred_check
      _
    $region11: #{tpu_custom_call.1} parent=1 // pred_check_branch
      %44 = sbr.rel (0) target = $region13
    $region12: #{tpu_custom_call.1} parent=1 // pred_region
      %46 = vsyncadd [#allocation6], 0
      %s47 = sshll.u32 %s2, 4
      %s48 = int_to_ptr.hbm [resolvable:$true] %s47
      %s49 = sshll.u32 [#allocation7], 4
      %s50 = int_to_ptr.vmem [resolvable:$true] %s49
      %55 = dma.hbm_to_vmem [thread:$0]  %s48, 256, %s50, [#allocation6], 64, 64, 4
    $region13: #{tpu_custom_call.1} parent=1 // pred_fallthru
      _
    // Predicated region
    $region14: #{tpu_custom_call.1} parent=1 // pred_check
      _
    $region15: #{tpu_custom_call.1} parent=1 // pred_check_branch
      %57 = sbr.rel (0) target = $region17
    $region16: #{tpu_custom_call.1} parent=1 // pred_region
      _
    $region17: #{tpu_custom_call.1} parent=1 // pred_fallthru
      _
    // Predicated region
    $region18: #{tpu_custom_call.1} parent=1 // pred_check
      _
    $region19: #{tpu_custom_call.1} parent=1 // pred_check_branch
      %59 = sbr.rel (0) target = $region21
    $region20: #{tpu_custom_call.1} parent=1 // pred_region
      _
    $region21: #{tpu_custom_call.1} parent=1 // pred_fallthru
      _
    // Predicated region
    $region22: #{tpu_custom_call.1} parent=1 // pred_check
      _
    $region23: #{tpu_custom_call.1} parent=1 // pred_check_branch
      %61 = sbr.rel (0) target = $region25
    $region24: #{tpu_custom_call.1} parent=1 // pred_region
      %63 = vsyncadd [#allocation9], 0
      %s65 = sshll.u32 %s5, 4
      %s66 = int_to_ptr.hbm [resolvable:$true] %s65
      %s67 = sshll.u32 [#allocation8], 4
      %s68 = int_to_ptr.vmem [resolvable:$true] %s67
      %70 = dma.hbm_to_vmem [thread:$0]  %s66, 128, %s68, [#allocation9]
    $region25: #{tpu_custom_call.1} parent=1 // pred_fallthru
      _
    // Predicated region
    $region26: #{tpu_custom_call.1} parent=1 // pred_check
      _
    $region27: #{tpu_custom_call.1} parent=1 // pred_check_branch
      %72 = sbr.rel (0) target = $region29
    $region28: #{tpu_custom_call.1} parent=1 // pred_region
      %74 = dma.done [#allocation3], 64
    $region29: #{tpu_custom_call.1} parent=1 // pred_fallthru
      _
    // Predicated region
    $region30: #{tpu_custom_call.1} parent=1 // pred_check
      _
    $region31: #{tpu_custom_call.1} parent=1 // pred_check_branch
      %76 = sbr.rel (0) target = $region33
    $region32: #{tpu_custom_call.1} parent=1 // pred_region
      %78 = dma.done [#allocation6], 256
    $region33: #{tpu_custom_call.1} parent=1 // pred_fallthru
      _
    // Predicated region
    $region34: #{tpu_custom_call.1} parent=1 // pred_check
      _
    $region35: #{tpu_custom_call.1} parent=1 // pred_check_branch
      %80 = sbr.rel (0) target = $region37
    $region36: #{tpu_custom_call.1} parent=1 // pred_region
      %82 = dma.done [#allocation6], 256
    $region37: #{tpu_custom_call.1} parent=1 // pred_fallthru
      _
    // Predicated region
    $region38: #{tpu_custom_call.1} parent=1 // pred_check
      _
    $region39: #{tpu_custom_call.1} parent=1 // pred_check_branch
      %84 = sbr.rel (0) target = $region41
    $region40: #{tpu_custom_call.1} parent=1 // pred_region
      %86 = dma.done [#allocation9], 128
    $region41: #{tpu_custom_call.1} parent=1 // pred_fallthru
      _
    %v88 = vld [vmem:[#allocation2] sm:$0xf]
    %v89 = vld [vmem:[#allocation5] sm:$0xf]
    %v90 = vld [vmem:[#allocation5 + $0x4] sm:$0xf]
    %v91 = vld [vmem:[#allocation5 + $0x8] sm:$0xf]
    %v92 = vld [vmem:[#allocation5 + $0xc] sm:$0xf]
    %v93 = vld [vmem:[#allocation7] sm:$0xf]
    %v94 = vld [vmem:[#allocation7 + $0x4] sm:$0xf]
    %v95 = vld [vmem:[#allocation7 + $0x8] sm:$0xf]
    %v96 = vld [vmem:[#allocation7 + $0xc] sm:$0xf]
    %v97 = vld [vmem:[%s3] sm:$0x1]
    %v99 = vperm.slane %v97, 0
    %v105 = vunpack.c.l.b16 %v89
    %v106 = vunpack.c.l.b16 %v90
    %v107 = vunpack.c.l.b16 %v91
    %v108 = vunpack.c.l.b16 %v92
    %v109 = vpack.c.b16 %v106, %v105
    %v110 = vpack.c.b16 %v108, %v107
    %vm113 = vcmask 261120
    %v115 = vsel %vm113, %v88, 0
    %117 = vmatpush.bf16.msra.mxu0 0
    %118 = vmatpush.bf16.msra.mxu0 0
    %119 = vmatpush.bf16.msra.mxu0 0
    %120 = vmatpush.bf16.msra.mxu0 0
    %121 = vmatpush.bf16.msra.mxu0 0
    %122 = vmatpush.bf16.msra.mxu0 0
    %123 = vmatpush.bf16.msra.mxu0 %v110
    %124 = vmatpush.bf16.msra.mxu0 %v109
    %125 = vmatmul.bf16.gmra.mxu0 %v115
    %v126 = vpop.f32.mrf.mxu0
    %v127 = vadd.f32 %v99, %v126
    %v128 = vpop.f32.mrf.mxu0
    %129 = vdwg.mxu0
    %v130 = vmax.f32 %v127, 0.0
    %v131 = vld [vmem:[%s4] sm:$0x1]
    %v133 = vperm.slane %v131, 0
    %v139 = vunpack.c.l.b16 %v93
    %v140 = vunpack.c.l.b16 %v94
    %v141 = vunpack.c.l.b16 %v95
    %v142 = vunpack.c.l.b16 %v96
    %v143 = vpack.c.b16 %v140, %v139
    %v144 = vpack.c.b16 %v142, %v141
    %147 = vmatpush.bf16.msra.mxu0 0
    %148 = vmatpush.bf16.msra.mxu0 0
    %149 = vmatpush.bf16.msra.mxu0 0
    %150 = vmatpush.bf16.msra.mxu0 0
    %151 = vmatpush.bf16.msra.mxu0 0
    %152 = vmatpush.bf16.msra.mxu0 0
    %153 = vmatpush.bf16.msra.mxu0 %v144
    %154 = vmatpush.bf16.msra.mxu0 %v143
    %155 = vmatmul.bf16.gmra.mxu0 %v115
    %v156 = vpop.f32.mrf.mxu0
    %v157 = vadd.f32 %v133, %v156
    %v158 = vpop.f32.mrf.mxu0
    %159 = vdwg.mxu0
    %v160 = vmax.f32 %v157, 0.0
    %v161 = vmul.f32 %v160, 0.5
    %v162 = vmul.f32 %v161, 1.442695
    %v163 = vpow.pop %v162
    %v164 = vld [vmem:[#allocation8] sm:$0xff]
    %v165 = vmul.f32 %v164, %v163
    %v166 = vadd.f32 %v130, %v165
    %167 = vst [vmem:[#allocation10] sm:$0xff] %v166
    %168 = vst [vmem:[#allocation11] sm:$0xff] %v130
    %169 = vst [vmem:[#allocation13] sm:$0xff] %v160
    // Predicated region
    $region42: #{tpu_custom_call.1} parent=1 // pred_check
      _
    $region43: #{tpu_custom_call.1} parent=1 // pred_check_branch
      %171 = sbr.rel (0) target = $region45
    $region44: #{tpu_custom_call.1} parent=1 // pred_region
      %173 = vsyncadd [#allocation4], 0
      %s175 = sshll.u32 [#allocation10], 4
      %s176 = int_to_ptr.vmem [resolvable:$true] %s175
      %s177 = sshll.u32 %s6, 4
      %s178 = int_to_ptr.hbm [resolvable:$true] %s177
      %180 = dma.vmem_to_hbm [thread:$0]  %s176, 128, %s178, [#allocation4]
    $region45: #{tpu_custom_call.1} parent=1 // pred_fallthru
      _
    // Predicated region
    $region46: #{tpu_custom_call.1} parent=1 // pred_check
      _
    $region47: #{tpu_custom_call.1} parent=1 // pred_check_branch
      %182 = sbr.rel (0) target = $region49
    $region48: #{tpu_custom_call.1} parent=1 // pred_region
      %184 = vsyncadd [#allocation12], 0
      %s186 = sshll.u32 [#allocation11], 4
      %s187 = int_to_ptr.vmem [resolvable:$true] %s186
      %s188 = sshll.u32 %s7, 4
      %s189 = int_to_ptr.hbm [resolvable:$true] %s188
      %191 = dma.vmem_to_hbm [thread:$0]  %s187, 128, %s189, [#allocation12]
    $region49: #{tpu_custom_call.1} parent=1 // pred_fallthru
      _
    // Predicated region
    $region50: #{tpu_custom_call.1} parent=1 // pred_check
      _
    $region51: #{tpu_custom_call.1} parent=1 // pred_check_branch
      %193 = sbr.rel (0) target = $region53
    $region52: #{tpu_custom_call.1} parent=1 // pred_region
      %195 = vsyncadd [#allocation12], 0
      %s197 = sshll.u32 [#allocation13], 4
      %s198 = int_to_ptr.vmem [resolvable:$true] %s197
      %s199 = sshll.u32 %s8, 4
      %s200 = int_to_ptr.hbm [resolvable:$true] %s199
      %202 = dma.vmem_to_hbm [thread:$0]  %s198, 128, %s200, [#allocation12]
    $region53: #{tpu_custom_call.1} parent=1 // pred_fallthru
      _
    // Predicated region
    $region54: #{tpu_custom_call.1} parent=1 // pred_check
      _
    $region55: #{tpu_custom_call.1} parent=1 // pred_check_branch
      %204 = sbr.rel (0) target = $region57
    $region56: #{tpu_custom_call.1} parent=1 // pred_region
      %206 = dma.done [#allocation4], 128
    $region57: #{tpu_custom_call.1} parent=1 // pred_fallthru
      _
    // Predicated region
    $region58: #{tpu_custom_call.1} parent=1 // pred_check
      _
    $region59: #{tpu_custom_call.1} parent=1 // pred_check_branch
      %208 = sbr.rel (0) target = $region61
    $region60: #{tpu_custom_call.1} parent=1 // pred_region
      %210 = dma.done [#allocation12], 128
    $region61: #{tpu_custom_call.1} parent=1 // pred_fallthru
      _
    // Predicated region
    $region62: #{tpu_custom_call.1} parent=1 // pred_check
      _
    $region63: #{tpu_custom_call.1} parent=1 // pred_check_branch
      %212 = sbr.rel (0) target = $region65
    $region64: #{tpu_custom_call.1} parent=1 // pred_region
      %214 = dma.done [#allocation12], 128
    $region65: #{tpu_custom_call.1} parent=1 // pred_fallthru
      _
    %215 = vsyncpa [#allocation3], 1
    %216 = vsyncpa [#allocation6], 1
    %217 = vsyncpa [#allocation9], 1
    %218 = vsyncpa [#allocation4], 1
    %219 = vsyncpa [#allocation12], 1

</llo_original>
